<compile_context>
chip_gen: v7x
topology: tpu7x:2x2x1
jax: 0.10.0
libtpu: 0.0.40
codegen_flags: <defaults>
</compile_context>

<pallas_src>
import jax
import jax.numpy as jnp
from jax.experimental import pallas as pl
from jax.experimental.pallas import tpu as pltpu


# ----------------------------------------------------------------------------
# Kernel
# ----------------------------------------------------------------------------
def _additive_attn_kernel(kv_ref, q_ref, wkv_ref, wq_ref, bsum_ref, wv_ref,
                          out_ref, weight_ref):
    # kv_ref:   (TB, S, KV_H)    q_ref:      (TB, Q_H)      (f32 or bf16)
    # wkv_ref:  (KV_H, A_pad)    wq_ref:     (Q_H, A_pad)   (same dtype as kv)
    # bsum_ref: (1, A_pad) f32   (= bkv + bq, zero-padded)
    # wv_ref:   (1, A_pad) f32   (score vector as a row, zero-padded)
    # out_ref:  (TB, KV_H) f32   weight_ref: (TB, S) f32
    TB, S, KV_H = kv_ref.shape

    kv = kv_ref[...]                                            # (TB, S, KV_H)

    # ---- fused projections on the MXU --------------------------------------
    # NOTE: the (TB,S,KV_H)->(TB*S,KV_H) reshape is a pure relabeling only when
    # S is a multiple of the sublane tile (8 f32 / 16 bf16); otherwise Mosaic
    # inserts a relayout copy (accounted for in the VMEM budget on the host).
    kv_proj = jnp.dot(kv.reshape(TB * S, KV_H), wkv_ref[...],
                      preferred_element_type=jnp.float32)       # (TB*S, A_pad)
    q_proj = jnp.dot(q_ref[...], wq_ref[...],
                     preferred_element_type=jnp.float32) + bsum_ref[...]  # (TB, A_pad)

    A_pad = kv_proj.shape[-1]
    hidden = jnp.tanh(kv_proj.reshape(TB, S, A_pad) + q_proj[:, None, :])

    # ---- lane-dense score on the VPU ----------------------------------------
    # bv dropped (constant shift of every score -> softmax-invariant);
    # zero-padded A columns contribute exactly 0.
    score = jnp.sum(hidden * wv_ref[...], axis=-1)              # (TB, S)

    # ---- numerically stable softmax over S (EXACT divide, not approx rcp) ---
    m = jnp.max(score, axis=-1, keepdims=True)                  # (TB, 1)
    e = jnp.exp(score - m)                                      # (TB, S)
    inv_l = 1.0 / jnp.sum(e, axis=-1, keepdims=True)            # (TB, 1)
    weight = e * inv_l
    weight_ref[...] = weight.astype(weight_ref.dtype)

    # ---- weighted sum over S as a batched MXU contraction -------------------
    # No (TB, S, KV_H) f32 elementwise-product temporary, no sublane reduce.
    ctx = jnp.einsum("bqs,bsh->bqh",
                     weight[:, None, :].astype(kv.dtype), kv,
                     preferred_element_type=jnp.float32)[:, 0, :]   # (TB, KV_H)
    out_ref[...] = ctx.astype(out_ref.dtype)


# ----------------------------------------------------------------------------
# Host-side planning helpers
# ----------------------------------------------------------------------------
def _round_up(x, m):
    return ((x + m - 1) // m) * m


def _vmem_capacity_bytes():
    """Physical per-core VMEM if queryable; conservative v7x (64 MiB) fallback."""
    try:
        return int(pltpu.get_tpu_info().vmem_capacity_bytes)
    except Exception:
        return 64 * 1024 * 1024


def _plan_tiles(B, S, KV_H, Q_H, A_pad, kv_itemsize):
    """VMEM-budget-derived batch tile + vmem limit."""
    vmem_phys = _vmem_capacity_bytes()
    budget = int(vmem_phys * 0.45)              # working-set budget per batch tile

    # Grid-invariant weights (still double-buffered by the pipeline; for very
    # large KV_H*A, pipeline_mode=pl.Buffered(1) on those specs halves this).
    weight_bytes = 2 * (KV_H + Q_H) * A_pad * kv_itemsize + 2 * 2 * A_pad * 4

    # Per batch-row bytes of one grid step.
    per_row = (3 * S * KV_H * kv_itemsize        # kv tile x2 (pipeline) + relayout copy
               + 2 * S * A_pad * 4               # kv_proj + hidden (f32)
               + Q_H * kv_itemsize + A_pad * 4   # q tile + q_proj
               + 6 * S * 4                       # score / exp / weight output (x2)
               + 3 * KV_H * 4)                   # ctx + output (x2)

    avail = max(budget - weight_bytes, 8 * per_row)
    cap = max(8, (avail // per_row) // 8 * 8)

    # Pad the batch only to a multiple of 8 and pick a tile that divides it,
    # preferring >= 4 grid steps (2 per core on megacore / 2-TC parts).
    b_pad = _round_up(B, 8)
    cands = [tb for tb in range(8, b_pad + 1, 8)
             if b_pad % tb == 0 and tb <= cap] or [8]
    good = [tb for tb in cands if b_pad // tb >= 4]
    tb = max(good) if good else max(cands)

    needed = weight_bytes + tb * per_row
    vmem_limit = int(min(vmem_phys * 3 // 4,
                         max(32 * 1024 * 1024, 2 * needed)))
    return tb, b_pad, vmem_limit


# ----------------------------------------------------------------------------
# Wrapper
# ----------------------------------------------------------------------------
def additive_attention(attention_kv, attention_query, params, *, use_bf16_kv=True):
    """attention_kv: (B, S, KV_H), attention_query: (B, Q_H) -> (output, weight)."""
    # TODO(synk): the module's 3-D attention_query branch (per-query-position
    # scores) is not implemented; this kernel covers the 2-D query forward.
    B, S, KV_H = attention_kv.shape
    Bq, Q_H = attention_query.shape
    assert Bq == B
    wkv, bkv, wq, bq, wv, bv = params
    A = wkv.shape[1]

    # ---- host-side parameter prep -------------------------------------------
    # Fold the two projection biases into one row, drop bv entirely (constant
    # shift -> softmax unchanged), and zero-pad A to a lane multiple (exact:
    # padded columns give tanh(0)=0 and zero score weight).
    A_pad = _round_up(A, 128)
    pad_a = A_pad - A
    wkv_p = jnp.pad(wkv, ((0, 0), (0, pad_a)))
    wq_p = jnp.pad(wq, ((0, 0), (0, pad_a)))
    bsum = jnp.pad((bkv + bq).astype(jnp.float32), ((0, pad_a),)).reshape(1, A_pad)
    wv_row = jnp.pad(wv.reshape(-1).astype(jnp.float32), ((0, pad_a),)).reshape(1, A_pad)

    kv = attention_kv
    q = attention_query
    if use_bf16_kv:
        # Halve the dominant HBM stream and run the MXU at bf16 rate; tanh /
        # softmax / normalization stay in f32 (v5e has no bf16 VPU/EUP) and the
        # matmuls accumulate in f32 via preferred_element_type.
        kv = kv.astype(jnp.bfloat16)
        q = q.astype(jnp.bfloat16)
        wkv_p = wkv_p.astype(jnp.bfloat16)
        wq_p = wq_p.astype(jnp.bfloat16)
    kv_itemsize = jnp.dtype(kv.dtype).itemsize

    # ---- batch tiling --------------------------------------------------------
    TB, B_pad, vmem_limit = _plan_tiles(B, S, KV_H, Q_H, A_pad, kv_itemsize)
    if B_pad != B:
        kv = jnp.pad(kv, ((0, B_pad - B), (0, 0), (0, 0)))
        q = jnp.pad(q, ((0, B_pad - B), (0, 0)))
    # TODO(synk): for very large S, add a second "arbitrary" grid axis over
    # S-chunks (online softmax with pl.when init/finalize) so TB is decoupled
    # from S*KV_H; at the sizes used here one S block fits comfortably.
    # NOTE: outputs (TB, KV_H) / (TB, S) are fully lane-dense only when
    # KV_H / S are multiples of 128; smaller model dims fall back to masked
    # partial stores (inherent to the model shape, not the tiling).

    grid_spec = pltpu.PrefetchScalarGridSpec(
        num_scalar_prefetch=0,
        grid=(B_pad // TB,),
        in_specs=[
            pl.BlockSpec((TB, S, KV_H), lambda b: (b, 0, 0)),   # kv batch tile
            pl.BlockSpec((TB, Q_H), lambda b: (b, 0)),          # query batch tile
            pl.BlockSpec((KV_H, A_pad), lambda b: (0, 0)),      # W_kv (grid-invariant)
            pl.BlockSpec((Q_H, A_pad), lambda b: (0, 0)),       # W_q
            pl.BlockSpec((1, A_pad), lambda b: (0, 0)),         # bkv + bq
            pl.BlockSpec((1, A_pad), lambda b: (0, 0)),         # score vector row
        ],
        out_specs=[
            pl.BlockSpec((TB, KV_H), lambda b: (b, 0)),
            pl.BlockSpec((TB, S), lambda b: (b, 0)),
        ],
    )

    out, weight = pl.pallas_call(
        _additive_attn_kernel,
        out_shape=(jax.ShapeDtypeStruct((B_pad, KV_H), jnp.float32),
                   jax.ShapeDtypeStruct((B_pad, S), jnp.float32)),
        grid_spec=grid_spec,
        compiler_params=pltpu.CompilerParams(
            dimension_semantics=("parallel",),      # megacore / v7x 2-TC sharding
            vmem_limit_bytes=vmem_limit),
    )(kv, q, wkv_p, wq_p, bsum, wv_row)

    if B_pad != B:
        out = out[:B]
        weight = weight[:B]
    return out, weight


# ----------------------------------------------------------------------------
# Parameters / references
# ----------------------------------------------------------------------------
def init_params(key, kv_hidden_size, query_hidden_size, attention_hidden_size):
    """nn.Linear-style init; weights stored as (in_features, out_features)."""
    ks = jax.random.split(key, 6)

    def lin(kw, kb, fan_in, fan_out):
        bound = 1.0 / jnp.sqrt(fan_in)
        w = jax.random.uniform(kw, (fan_in, fan_out), jnp.float32, -bound, bound)
        b = jax.random.uniform(kb, (fan_out,), jnp.float32, -bound, bound)
        return w, b

    wkv, bkv = lin(ks[0], ks[1], kv_hidden_size, attention_hidden_size)
    wq, bq = lin(ks[2], ks[3], query_hidden_size, attention_hidden_size)
    wv, bv = lin(ks[4], ks[5], attention_hidden_size, 1)
    return wkv, bkv, wq, bq, wv, bv


def reference(attention_kv, attention_query, params):
    wkv, bkv, wq, bq, wv, bv = params
    hidden = jnp.tanh(attention_kv @ wkv + bkv
                      + (attention_query @ wq + bq)[:, None, :])
    score = (hidden @ wv + bv)[..., 0]
    weight = jax.nn.softmax(score, axis=-1)
    output = jnp.einsum("bs,bsh->bh", weight, attention_kv)
    return output, weight


def reference_bf16(attention_kv, attention_query, params):
    """Reference with the same bf16 truncation of kv/q/W_kv/W_q the default
    kernel path applies (biases and the score vector stay f32)."""
    wkv, bkv, wq, bq, wv, bv = params
    tr = lambda x: x.astype(jnp.bfloat16).astype(jnp.float32)
    return reference(tr(attention_kv), tr(attention_query),
                     (tr(wkv), bkv, tr(wq), bq, wv, bv))


# ----------------------------------------------------------------------------
# Self-test
# ----------------------------------------------------------------------------
if __name__ == "__main__":
    B, S = 2, 8
    KV_H, Q_H, A = 32, 16, 32

    key = jax.random.PRNGKey(0)
    k_kv, k_q, k_p = jax.random.split(key, 3)
    attention_kv = jax.random.normal(k_kv, (B, S, KV_H), jnp.float32)
    attention_query = jax.random.normal(k_q, (B, Q_H), jnp.float32)
    params = init_params(k_p, KV_H, Q_H, A)

    # ---- f32 path: strict check against the exact reference -----------------
    out, weight = additive_attention(attention_kv, attention_query, params,
                                     use_bf16_kv=False)
    out = jax.block_until_ready(out)
    weight = jax.block_until_ready(weight)
    ref_out, ref_weight = reference(attention_kv, attention_query, params)
    # 5e-3: covers XLA-vs-Mosaic default f32 matmul precision (bf16 MXU passes)
    # and EUP tanh/exp; the softmax normalization itself is exact.
    assert jnp.allclose(out, ref_out, atol=5e-3, rtol=5e-3), \
        float(jnp.max(jnp.abs(out - ref_out)))
    assert jnp.allclose(weight, ref_weight, atol=5e-3, rtol=5e-3), \
        float(jnp.max(jnp.abs(weight - ref_weight)))

    # ---- default path (bf16 kv): check against a bf16-truncated reference ---
    out_bf, weight_bf = additive_attention(attention_kv, attention_query, params)
    out_bf = jax.block_until_ready(out_bf)
    weight_bf = jax.block_until_ready(weight_bf)
    ref_out_bf, ref_weight_bf = reference_bf16(attention_kv, attention_query, params)
    assert jnp.allclose(out_bf, ref_out_bf, atol=2e-2, rtol=2e-2), \
        float(jnp.max(jnp.abs(out_bf - ref_out_bf)))
    assert jnp.allclose(weight_bf, ref_weight_bf, atol=2e-2, rtol=2e-2), \
        float(jnp.max(jnp.abs(weight_bf - ref_weight_bf)))

    print("KERNEL_OK")
</pallas_src>

<mosaic_0001>
module attributes {stable_mosaic.version = 11 : i64} {
  func.func @_additive_attn_kernel(%arg0: i32, %arg1: memref<8x8x32xf32, #tpu.memory_space<vmem>>, %arg2: memref<8x16xf32, #tpu.memory_space<vmem>>, %arg3: memref<32x128xf32, #tpu.memory_space<vmem>>, %arg4: memref<16x128xf32, #tpu.memory_space<vmem>>, %arg5: memref<1x128xf32, #tpu.memory_space<vmem>>, %arg6: memref<1x128xf32, #tpu.memory_space<vmem>>, %arg7: memref<8x32xf32, #tpu.memory_space<vmem>>, %arg8: memref<8x8xf32, #tpu.memory_space<vmem>>) attributes {dimension_semantics = [#tpu.dimension_semantics<parallel>], iteration_bounds = array<i64: 1>, scalar_prefetch = 0 : i64, scratch_operands = 0 : i64, tpu.core_type = #tpu.core_type<tc>, window_params = [{transform_indices = @transform_0, window_bounds = array<i64: 8, 8, 32>}, {transform_indices = @transform_1, window_bounds = array<i64: 8, 16>}, {pipeline_mode = #tpu.pipeline_mode<synchronous>, transform_indices = @transform_2, window_bounds = array<i64: 32, 128>}, {pipeline_mode = #tpu.pipeline_mode<synchronous>, transform_indices = @transform_3, window_bounds = array<i64: 16, 128>}, {pipeline_mode = #tpu.pipeline_mode<synchronous>, transform_indices = @transform_4, window_bounds = array<i64: 1, 128>}, {pipeline_mode = #tpu.pipeline_mode<synchronous>, transform_indices = @transform_5, window_bounds = array<i64: 1, 128>}, {transform_indices = @transform_6, window_bounds = array<i64: 8, 32>}, {transform_indices = @transform_7, window_bounds = array<i64: 8, 8>}]} {
    %c0 = arith.constant 0 : index
    %c0_0 = arith.constant 0 : index
    %c0_1 = arith.constant 0 : index
    %0 = vector.load %arg1[%c0, %c0_0, %c0_1] : memref<8x8x32xf32, #tpu.memory_space<vmem>>, vector<8x8x32xf32>
    %1 = vector.shape_cast %0 : vector<8x8x32xf32> to vector<64x32xf32>
    %c0_2 = arith.constant 0 : index
    %c0_3 = arith.constant 0 : index
    %2 = vector.load %arg3[%c0_2, %c0_3] : memref<32x128xf32, #tpu.memory_space<vmem>>, vector<32x128xf32>
    %cst = arith.constant dense<0.000000e+00> : vector<64x128xf32>
    %3 = tpu.matmul %1, %2, %cst {dimension_numbers = #tpu.dot_dimension_numbers<[1], [0], [0], [1], [0, 0, 1, 1], [], []>} : vector<64x32xf32>, vector<32x128xf32>, vector<64x128xf32> -> vector<64x128xf32>
    %c0_4 = arith.constant 0 : index
    %c0_5 = arith.constant 0 : index
    %4 = vector.load %arg2[%c0_4, %c0_5] : memref<8x16xf32, #tpu.memory_space<vmem>>, vector<8x16xf32>
    %c0_6 = arith.constant 0 : index
    %c0_7 = arith.constant 0 : index
    %5 = vector.load %arg4[%c0_6, %c0_7] : memref<16x128xf32, #tpu.memory_space<vmem>>, vector<16x128xf32>
    %cst_8 = arith.constant dense<0.000000e+00> : vector<8x128xf32>
    %6 = tpu.matmul %4, %5, %cst_8 {dimension_numbers = #tpu.dot_dimension_numbers<[1], [0], [0], [1], [0, 0, 1, 1], [], []>} : vector<8x16xf32>, vector<16x128xf32>, vector<8x128xf32> -> vector<8x128xf32>
    %c0_9 = arith.constant 0 : index
    %c0_10 = arith.constant 0 : index
    %7 = vector.load %arg5[%c0_9, %c0_10] : memref<1x128xf32, #tpu.memory_space<vmem>>, vector<1x128xf32>
    %8 = vector.broadcast %7 : vector<1x128xf32> to vector<8x128xf32>
    %9 = arith.addf %6, %8 : vector<8x128xf32>
    %10 = vector.shape_cast %3 : vector<64x128xf32> to vector<8x8x128xf32>
    %11 = vector.shape_cast %9 : vector<8x128xf32> to vector<8x1x128xf32>
    %12 = vector.broadcast %11 : vector<8x1x128xf32> to vector<8x8x128xf32>
    %13 = arith.addf %10, %12 : vector<8x8x128xf32>
    %14 = math.tanh %13 : vector<8x8x128xf32>
    %c0_11 = arith.constant 0 : index
    %c0_12 = arith.constant 0 : index
    %15 = vector.load %arg6[%c0_11, %c0_12] : memref<1x128xf32, #tpu.memory_space<vmem>>, vector<1x128xf32>
    %16 = vector.shape_cast %15 : vector<1x128xf32> to vector<1x1x128xf32>
    %17 = vector.broadcast %16 : vector<1x1x128xf32> to vector<8x8x128xf32>
    %18 = arith.mulf %14, %17 : vector<8x8x128xf32>
    %cst_13 = arith.constant dense<0.000000e+00> : vector<8x8xf32>
    %19 = vector.multi_reduction <add>, %18, %cst_13 [2] : vector<8x8x128xf32> to vector<8x8xf32>
    %cst_14 = arith.constant dense<0xFF800000> : vector<8xf32>
    %20 = vector.multi_reduction <maximumf>, %19, %cst_14 [1] : vector<8x8xf32> to vector<8xf32>
    %21 = vector.shape_cast %20 : vector<8xf32> to vector<8x1xf32>
    %22 = vector.broadcast %21 : vector<8x1xf32> to vector<8x8xf32>
    %23 = arith.subf %19, %22 : vector<8x8xf32>
    %24 = math.exp %23 : vector<8x8xf32>
    %cst_15 = arith.constant dense<0.000000e+00> : vector<8xf32>
    %25 = vector.multi_reduction <add>, %24, %cst_15 [1] : vector<8x8xf32> to vector<8xf32>
    %26 = vector.shape_cast %25 : vector<8xf32> to vector<8x1xf32>
    %cst_16 = arith.constant 1.000000e+00 : f32
    %27 = vector.broadcast %cst_16 : f32 to vector<8x1xf32>
    %28 = arith.divf %27, %26 : vector<8x1xf32>
    %29 = vector.broadcast %28 : vector<8x1xf32> to vector<8x8xf32>
    %30 = arith.mulf %24, %29 : vector<8x8xf32>
    %c0_17 = arith.constant 0 : index
    %c0_18 = arith.constant 0 : index
    %31 = vector.load %arg8[%c0_17, %c0_18] : memref<8x8xf32, #tpu.memory_space<vmem>>, vector<8x8xf32>
    tpu.vector_store %arg8[%c0_17, %c0_18], %30 {strides = array<i32>} : memref<8x8xf32, #tpu.memory_space<vmem>>, vector<8x8xf32>,
    %32 = vector.shape_cast %30 : vector<8x8xf32> to vector<8x1x8xf32>
    "tpu.trace_start"() <{level = 10 : i32, message = "bqs,bsh->bqh"}> : () -> ()
    %cst_19 = arith.constant dense<0.000000e+00> : vector<8x1x32xf32>
    %33 = tpu.matmul %32, %0, %cst_19 {dimension_numbers = #tpu.dot_dimension_numbers<[2], [1], [1], [2], [0, 0, 0, 1, 1, 2], [0], [0]>} : vector<8x1x8xf32>, vector<8x8x32xf32>, vector<8x1x32xf32> -> vector<8x1x32xf32>
    "tpu.trace_stop"() : () -> ()
    %34 = vector.shape_cast %33 : vector<8x1x32xf32> to vector<8x32xf32>
    %c0_20 = arith.constant 0 : index
    %c0_21 = arith.constant 0 : index
    %35 = vector.load %arg7[%c0_20, %c0_21] : memref<8x32xf32, #tpu.memory_space<vmem>>, vector<8x32xf32>
    tpu.vector_store %arg7[%c0_20, %c0_21], %34 {strides = array<i32>} : memref<8x32xf32, #tpu.memory_space<vmem>>, vector<8x32xf32>,
    return
  }
  func.func @transform_0(%arg0: i32) -> (i32, i32, i32) {
    %c0_i32 = arith.constant 0 : i32
    %c0_i32_0 = arith.constant 0 : i32
    %c0_i32_1 = arith.constant 0 : i32
    return %arg0, %c0_i32, %c0_i32_0 : i32, i32, i32
  }
  func.func @transform_1(%arg0: i32) -> (i32, i32) {
    %c0_i32 = arith.constant 0 : i32
    %c0_i32_0 = arith.constant 0 : i32
    return %arg0, %c0_i32 : i32, i32
  }
  func.func @transform_2(%arg0: i32) -> (i32, i32) {
    %c0_i32 = arith.constant 0 : i32
    %c0_i32_0 = arith.constant 0 : i32
    %c0_i32_1 = arith.constant 0 : i32
    return %c0_i32, %c0_i32_0 : i32, i32
  }
  func.func @transform_3(%arg0: i32) -> (i32, i32) {
    %c0_i32 = arith.constant 0 : i32
    %c0_i32_0 = arith.constant 0 : i32
    %c0_i32_1 = arith.constant 0 : i32
    return %c0_i32, %c0_i32_0 : i32, i32
  }
  func.func @transform_4(%arg0: i32) -> (i32, i32) {
    %c0_i32 = arith.constant 0 : i32
    %c0_i32_0 = arith.constant 0 : i32
    %c0_i32_1 = arith.constant 0 : i32
    return %c0_i32, %c0_i32_0 : i32, i32
  }
  func.func @transform_5(%arg0: i32) -> (i32, i32) {
    %c0_i32 = arith.constant 0 : i32
    %c0_i32_0 = arith.constant 0 : i32
    %c0_i32_1 = arith.constant 0 : i32
    return %c0_i32, %c0_i32_0 : i32, i32
  }
  func.func @transform_6(%arg0: i32) -> (i32, i32) {
    %c0_i32 = arith.constant 0 : i32
    %c0_i32_0 = arith.constant 0 : i32
    return %arg0, %c0_i32 : i32, i32
  }
  func.func @transform_7(%arg0: i32) -> (i32, i32) {
    %c0_i32 = arith.constant 0 : i32
    %c0_i32_0 = arith.constant 0 : i32
    return %arg0, %c0_i32 : i32, i32
  }
}

</mosaic_0001>

<llo_original>
// kernel: tpu_custom_call.1
$region0: #{tpu_custom_call.1}
  #allocation0 [shape = 'u32[]', space=smem, size = 0x4, offset = 0x4, fixed_abs, tag = 'smem constant byte address 0x4 - core index']
  #allocation1 [shape = 'u32[144,128]{1,0:T(1,128)}', space=vmem, size = 0x12000, scoped, tag = 'internal scratch']
  %s0 = inlined_call_operand.hbm [shape: f32[8,8,32], index: 0, kind: input, shape index: {}]
  %s1 = inlined_call_operand.hbm [shape: f32[8,16], index: 1, kind: input, shape index: {}]
  %s2 = inlined_call_operand.hbm [shape: f32[32,128], index: 2, kind: input, shape index: {}]
  %s3 = inlined_call_operand.hbm [shape: f32[16,128], index: 3, kind: input, shape index: {}]
  %s4 = inlined_call_operand.vmem [shape: f32[1,128], index: 4, kind: input, shape index: {}]
  %s5 = inlined_call_operand.vmem [shape: f32[1,128], index: 5, kind: input, shape index: {}]
  %s6 = inlined_call_operand.hbm [shape: f32[8,32], index: 6, kind: output, shape index: {0}]
  %s7 = inlined_call_operand.hbm [shape: f32[8,8], index: 7, kind: output, shape index: {1}]
  %8 = xla_tuple %s6, %s7
  %s9 = sld [smem:[#allocation0]]
  $region58: #{tpu_custom_call.1} parent=0
    _
  %s11 = ssub.s32 1, %s9
  %s12 = scalar_select 0, %s11, %s9
  $region1: #{tpu_custom_call.1} parent=0
    #allocation2 [shape = 'u8[32768]{0}', space=vmem, size = 0x8000, scoped, tag = 'input window, operand 0, single buffered']
    #allocation3 [shape = 's32[1]{0}', space=sflag, size = 0x4, scoped, tag = 'scoped memory for tpu_custom_call.1']
    #allocation4 [shape = 's32[1]{0}', space=sflag, size = 0x4, scoped, tag = 'scoped memory for tpu_custom_call.1']
    #allocation5 [shape = 'u8[4096]{0}', space=vmem, size = 0x1000, scoped, tag = 'input window, operand 1, single buffered']
    #allocation6 [shape = 's32[1]{0}', space=sflag, size = 0x4, scoped, tag = 'scoped memory for tpu_custom_call.1']
    #allocation7 [shape = 'u8[16384]{0}', space=vmem, size = 0x4000, scoped, tag = 'input window, operand 2, single buffered']
    #allocation8 [shape = 'u8[8192]{0}', space=vmem, size = 0x2000, scoped, tag = 'input window, operand 3, single buffered']
    #allocation9 [shape = 's32[1]{0}', space=sflag, size = 0x4, scoped, tag = 'scoped memory for tpu_custom_call.1']
    #allocation10 [shape = 'u8[4096]{0}', space=vmem, size = 0x1000, scoped, tag = 'output window, operand 0, single buffered']
    #allocation11 [shape = 'u8[4096]{0}', space=vmem, size = 0x1000, scoped, tag = 'output window, operand 1, single buffered']
    #allocation12 [shape = 's32[1]{0}', space=sflag, size = 0x4, scoped, tag = 'scoped memory for tpu_custom_call.1']
    %13 = vsyncpa [#allocation3], 0
    %14 = vsyncpa [#allocation6], 0
    %15 = vsyncpa [#allocation9], 0
    %16 = vsyncpa [#allocation4], 0
    %17 = vsyncpa [#allocation12], 0
    // Predicated region
    $region2: #{tpu_custom_call.1} parent=1 // pred_check
      _
    $region3: #{tpu_custom_call.1} parent=1 // pred_check_branch
      %19 = sbr.rel (0) target = $region5
    $region4: #{tpu_custom_call.1} parent=1 // pred_region
      %s21 = ssub.s32 1024, 1024
      %22 = vsyncadd [#allocation3], %s21
      %s23 = sshll.u32 [#allocation2], 4
      %s24 = int_to_ptr.vmem [resolvable:$true] %s23
      %29 = dma.hbm_to_vmem [thread:$0]  %s0, 1024, %s24, [#allocation3], 128, 128, 8
    $region5: #{tpu_custom_call.1} parent=1 // pred_fallthru
      _
    // Predicated region
    $region6: #{tpu_custom_call.1} parent=1 // pred_check
      _
    $region7: #{tpu_custom_call.1} parent=1 // pred_check_branch
      %31 = sbr.rel (0) target = $region9
    $region8: #{tpu_custom_call.1} parent=1 // pred_region
      %s33 = ssub.s32 128, 128
      %34 = vsyncadd [#allocation6], %s33
      %s36 = sshll.u32 [#allocation5], 4
      %s37 = int_to_ptr.vmem [resolvable:$true] %s36
      %39 = dma.hbm_to_vmem [thread:$0]  %s1, 128, %s37, [#allocation6]
    $region9: #{tpu_custom_call.1} parent=1 // pred_fallthru
      _
    // Predicated region
    $region10: #{tpu_custom_call.1} parent=1 // pred_check
      _
    $region11: #{tpu_custom_call.1} parent=1 // pred_check_branch
      %41 = sbr.rel (0) target = $region13
    $region12: #{tpu_custom_call.1} parent=1 // pred_region
      %s43 = ssub.s32 512, 512
      %44 = vsyncadd [#allocation6], %s43
      %s45 = sshll.u32 [#allocation7], 4
      %s46 = int_to_ptr.vmem [resolvable:$true] %s45
      %51 = dma.hbm_to_vmem [thread:$0]  %s2, 512, %s46, [#allocation6], 128, 128, 8
    $region13: #{tpu_custom_call.1} parent=1 // pred_fallthru
      _
    // Predicated region
    $region14: #{tpu_custom_call.1} parent=1 // pred_check
      _
    $region15: #{tpu_custom_call.1} parent=1 // pred_check_branch
      %53 = sbr.rel (0) target = $region17
    $region16: #{tpu_custom_call.1} parent=1 // pred_region
      %s55 = ssub.s32 256, 256
      %56 = vsyncadd [#allocation9], %s55
      %s57 = sshll.u32 [#allocation8], 4
      %s58 = int_to_ptr.vmem [resolvable:$true] %s57
      %63 = dma.hbm_to_vmem [thread:$0]  %s3, 256, %s58, [#allocation9], 128, 128, 8
    $region17: #{tpu_custom_call.1} parent=1 // pred_fallthru
      _
    // Predicated region
    $region18: #{tpu_custom_call.1} parent=1 // pred_check
      _
    $region19: #{tpu_custom_call.1} parent=1 // pred_check_branch
      %65 = sbr.rel (0) target = $region21
    $region20: #{tpu_custom_call.1} parent=1 // pred_region
      _
    $region21: #{tpu_custom_call.1} parent=1 // pred_fallthru
      _
    // Predicated region
    $region22: #{tpu_custom_call.1} parent=1 // pred_check
      _
    $region23: #{tpu_custom_call.1} parent=1 // pred_check_branch
      %67 = sbr.rel (0) target = $region25
    $region24: #{tpu_custom_call.1} parent=1 // pred_region
      _
    $region25: #{tpu_custom_call.1} parent=1 // pred_fallthru
      _
    // Predicated region
    $region26: #{tpu_custom_call.1} parent=1 // pred_check
      _
    $region27: #{tpu_custom_call.1} parent=1 // pred_check_branch
      %69 = sbr.rel (0) target = $region29
    $region28: #{tpu_custom_call.1} parent=1 // pred_region
      %70 = dma.done [#allocation3], 1024
    $region29: #{tpu_custom_call.1} parent=1 // pred_fallthru
      _
    // Predicated region
    $region30: #{tpu_custom_call.1} parent=1 // pred_check
      _
    $region31: #{tpu_custom_call.1} parent=1 // pred_check_branch
      %72 = sbr.rel (0) target = $region33
    $region32: #{tpu_custom_call.1} parent=1 // pred_region
      %73 = dma.done [#allocation6], 128
    $region33: #{tpu_custom_call.1} parent=1 // pred_fallthru
      _
    // Predicated region
    $region34: #{tpu_custom_call.1} parent=1 // pred_check
      _
    $region35: #{tpu_custom_call.1} parent=1 // pred_check_branch
      %75 = sbr.rel (0) target = $region37
    $region36: #{tpu_custom_call.1} parent=1 // pred_region
      %76 = dma.done [#allocation6], 512
    $region37: #{tpu_custom_call.1} parent=1 // pred_fallthru
      _
    // Predicated region
    $region38: #{tpu_custom_call.1} parent=1 // pred_check
      _
    $region39: #{tpu_custom_call.1} parent=1 // pred_check_branch
      %78 = sbr.rel (0) target = $region41
    $region40: #{tpu_custom_call.1} parent=1 // pred_region
      %79 = dma.done [#allocation9], 256
    $region41: #{tpu_custom_call.1} parent=1 // pred_fallthru
      _
    %v80 = vld [vmem:[#allocation2] sm:$0xff]
    %v81 = vld [vmem:[#allocation2 + $0x8] sm:$0xff]
    %v82 = vld [vmem:[#allocation2 + $0x10] sm:$0xff]
    %v83 = vld [vmem:[#allocation2 + $0x18] sm:$0xff]
    %v84 = vld [vmem:[#allocation2 + $0x20] sm:$0xff]
    %v85 = vld [vmem:[#allocation2 + $0x28] sm:$0xff]
    %v86 = vld [vmem:[#allocation2 + $0x30] sm:$0xff]
    %v87 = vld [vmem:[#allocation2 + $0x38] sm:$0xff]
    %v88 = vld [vmem:[#allocation7] sm:$0xff]
    %v89 = vld [vmem:[#allocation7 + $0x8] sm:$0xff]
    %v90 = vld [vmem:[#allocation7 + $0x10] sm:$0xff]
    %v91 = vld [vmem:[#allocation7 + $0x18] sm:$0xff]
    %vm92 = vcmask 261120
    %v94 = vsel %vm92, %v80, 0
    %v97 = vsel %vm92, %v81, 0
    %v100 = vsel %vm92, %v82, 0
    %v103 = vsel %vm92, %v83, 0
    %v106 = vsel %vm92, %v84, 0
    %v109 = vsel %vm92, %v85, 0
    %v112 = vsel %vm92, %v86, 0
    %v115 = vsel %vm92, %v87, 0
    %117 = vmatprep.subr.mxu0 0.0
    %118 = vmatpush1.msra.mxu0 %v88
    %119 = vmatprep.subr.mxu0 0.0
    %120 = vmatpush1.msra.mxu0 %v89
    %121 = vmatprep.subr.mxu0 0.0
    %122 = vmatpush1.msra.mxu0 %v90
    %123 = vmatprep.subr.mxu0 0.0
    %124 = vmatpush1.msra.mxu0 %v91
    %125 = vmatprep.subr.mxu0 0.0
    %126 = vmatpush1.msra.mxu0 0.0
    %127 = vmatprep.subr.mxu0 0.0
    %128 = vmatpush1.msra.mxu0 0.0
    %129 = vmatprep.subr.mxu0 0.0
    %130 = vmatpush1.msra.mxu0 0.0
    %131 = vmatprep.subr.mxu0 0.0
    %132 = vmatpush1.msra.mxu0 0.0
    %133 = vmatprep.subr.mxu0 0.0
    %134 = vmatpush1.msra.mxu0 0.0
    %135 = vmatprep.subr.mxu0 0.0
    %136 = vmatpush1.msra.mxu0 0.0
    %137 = vmatprep.subr.mxu0 0.0
    %138 = vmatpush1.msra.mxu0 0.0
    %139 = vmatprep.subr.mxu0 0.0
    %140 = vmatpush1.msra.mxu0 0.0
    %141 = vmatprep.subr.mxu0 0.0
    %142 = vmatpush1.msra.mxu0 0.0
    %143 = vmatprep.subr.mxu0 0.0
    %144 = vmatpush1.msra.mxu0 0.0
    %145 = vmatprep.subr.mxu0 0.0
    %146 = vmatpush1.msra.mxu0 0.0
    %147 = vmatprep.subr.mxu0 0.0
    %148 = vmatpush1.msra.mxu0 0.0
    %149 = vmatprep.subr.mxu0 0.0
    %150 = vmatpush1.msra.mxu0 0.0
    %151 = vmatprep.subr.mxu0 0.0
    %152 = vmatpush1.msra.mxu0 0.0
    %153 = vmatprep.subr.mxu0 0.0
    %154 = vmatpush1.msra.mxu0 0.0
    %155 = vmatprep.subr.mxu0 0.0
    %156 = vmatpush1.msra.mxu0 0.0
    %157 = vmatprep.subr.mxu0 0.0
    %158 = vmatpush1.msra.mxu0 0.0
    %159 = vmatprep.subr.mxu0 0.0
    %160 = vmatpush1.msra.mxu0 0.0
    %161 = vmatprep.subr.mxu0 0.0
    %162 = vmatpush1.msra.mxu0 0.0
    %163 = vmatprep.subr.mxu0 0.0
    %164 = vmatpush1.msra.mxu0 0.0
    %165 = vmatprep.subr.mxu0 0.0
    %166 = vmatpush1.msra.mxu0 0.0
    %167 = vmatprep.subr.mxu0 0.0
    %168 = vmatpush1.msra.mxu0 0.0
    %169 = vmatprep.subr.mxu0 0.0
    %170 = vmatpush1.msra.mxu0 0.0
    %171 = vmatprep.subr.mxu0 0.0
    %172 = vmatpush1.msra.mxu0 0.0
    %173 = vmatprep.subr.mxu0 0.0
    %174 = vmatpush1.msra.mxu0 0.0
    %175 = vmatprep.subr.mxu0 0.0
    %176 = vmatpush1.msra.mxu0 0.0
    %177 = vmatprep.subr.mxu0 0.0
    %178 = vmatpush1.msra.mxu0 0.0
    %179 = vmatprep.subr.mxu0 0.0
    %180 = vmatpush1.msra.mxu0 0.0
    %181 = vmatprep.mubr.f32.mxu0 0.0
    %182 = vmatmul.mubr.f32.gmra.mrb[0].mxu0 %v94
    %v183 = vpop.f32.mrb[0].mxu0
    %v184 = vadd.f32 0.0, %v183
    %v185 = vpop.f32.mrb[0].mxu0
    %186 = vmatprep.mubr.f32.mxu0 0.0
    %187 = vmatmul.mubr.f32.gmra.mrb[0].mxu0 %v97
    %v188 = vpop.f32.mrb[0].mxu0
    %v189 = vadd.f32 0.0, %v188
    %v190 = vpop.f32.mrb[0].mxu0
    %191 = vmatprep.mubr.f32.mxu0 0.0
    %192 = vmatmul.mubr.f32.gmra.mrb[0].mxu0 %v100
    %v193 = vpop.f32.mrb[0].mxu0
    %v194 = vadd.f32 0.0, %v193
    %v195 = vpop.f32.mrb[0].mxu0
    %196 = vmatprep.mubr.f32.mxu0 0.0
    %197 = vmatmul.mubr.f32.gmra.mrb[0].mxu0 %v103
    %v198 = vpop.f32.mrb[0].mxu0
    %v199 = vadd.f32 0.0, %v198
    %v200 = vpop.f32.mrb[0].mxu0
    %201 = vmatprep.mubr.f32.mxu0 0.0
    %202 = vmatmul.mubr.f32.gmra.mrb[0].mxu0 %v106
    %v203 = vpop.f32.mrb[0].mxu0
    %v204 = vadd.f32 0.0, %v203
    %v205 = vpop.f32.mrb[0].mxu0
    %206 = vmatprep.mubr.f32.mxu0 0.0
    %207 = vmatmul.mubr.f32.gmra.mrb[0].mxu0 %v109
    %v208 = vpop.f32.mrb[0].mxu0
    %v209 = vadd.f32 0.0, %v208
    %v210 = vpop.f32.mrb[0].mxu0
    %211 = vmatprep.mubr.f32.mxu0 0.0
    %212 = vmatmul.mubr.f32.gmra.mrb[0].mxu0 %v112
    %v213 = vpop.f32.mrb[0].mxu0
    %v214 = vadd.f32 0.0, %v213
    %v215 = vpop.f32.mrb[0].mxu0
    %216 = vmatprep.mubr.f32.mxu0 0.0
    %217 = vmatmul.mubr.f32.gmra.mrb[0].mxu0 %v115
    %v218 = vpop.f32.mrb[0].mxu0
    %v219 = vadd.f32 0.0, %v218
    %v220 = vpop.f32.mrb[0].mxu0
    %221 = vdwg.mxu0
    %v222 = vld [vmem:[#allocation5] sm:$0xff]
    %v223 = vld [vmem:[#allocation8] sm:$0xff]
    %v224 = vld [vmem:[#allocation8 + $0x8] sm:$0xff]
    %v225 = vld [vmem:[%s4] sm:$0x1]
    %v227 = vlaneseq
    %v228 = vshrl.u32 %v227, 7
    %v229 = vsub.s32 0, %v228
    %v230 = vrot.slane %v225, %v229
    %vm232 = vcmask 130048
    %v234 = vsel %vm232, %v222, 0
    %236 = vmatprep.subr.mxu0 0.0
    %237 = vmatpush1.msra.mxu0 %v223
    %238 = vmatprep.subr.mxu0 0.0
    %239 = vmatpush1.msra.mxu0 %v224
    %240 = vmatprep.subr.mxu0 0.0
    %241 = vmatpush1.msra.mxu0 0.0
    %242 = vmatprep.subr.mxu0 0.0
    %243 = vmatpush1.msra.mxu0 0.0
    %244 = vmatprep.subr.mxu0 0.0
    %245 = vmatpush1.msra.mxu0 0.0
    %246 = vmatprep.subr.mxu0 0.0
    %247 = vmatpush1.msra.mxu0 0.0
    %248 = vmatprep.subr.mxu0 0.0
    %249 = vmatpush1.msra.mxu0 0.0
    %250 = vmatprep.subr.mxu0 0.0
    %251 = vmatpush1.msra.mxu0 0.0
    %252 = vmatprep.subr.mxu0 0.0
    %253 = vmatpush1.msra.mxu0 0.0
    %254 = vmatprep.subr.mxu0 0.0
    %255 = vmatpush1.msra.mxu0 0.0
    %256 = vmatprep.subr.mxu0 0.0
    %257 = vmatpush1.msra.mxu0 0.0
    %258 = vmatprep.subr.mxu0 0.0
    %259 = vmatpush1.msra.mxu0 0.0
    %260 = vmatprep.subr.mxu0 0.0
    %261 = vmatpush1.msra.mxu0 0.0
    %262 = vmatprep.subr.mxu0 0.0
    %263 = vmatpush1.msra.mxu0 0.0
    %264 = vmatprep.subr.mxu0 0.0
    %265 = vmatpush1.msra.mxu0 0.0
    %266 = vmatprep.subr.mxu0 0.0
    %267 = vmatpush1.msra.mxu0 0.0
    %268 = vmatprep.subr.mxu0 0.0
    %269 = vmatpush1.msra.mxu0 0.0
    %270 = vmatprep.subr.mxu0 0.0
    %271 = vmatpush1.msra.mxu0 0.0
    %272 = vmatprep.subr.mxu0 0.0
    %273 = vmatpush1.msra.mxu0 0.0
    %274 = vmatprep.subr.mxu0 0.0
    %275 = vmatpush1.msra.mxu0 0.0
    %276 = vmatprep.subr.mxu0 0.0
    %277 = vmatpush1.msra.mxu0 0.0
    %278 = vmatprep.subr.mxu0 0.0
    %279 = vmatpush1.msra.mxu0 0.0
    %280 = vmatprep.subr.mxu0 0.0
    %281 = vmatpush1.msra.mxu0 0.0
    %282 = vmatprep.subr.mxu0 0.0
    %283 = vmatpush1.msra.mxu0 0.0
    %284 = vmatprep.subr.mxu0 0.0
    %285 = vmatpush1.msra.mxu0 0.0
    %286 = vmatprep.subr.mxu0 0.0
    %287 = vmatpush1.msra.mxu0 0.0
    %288 = vmatprep.subr.mxu0 0.0
    %289 = vmatpush1.msra.mxu0 0.0
    %290 = vmatprep.subr.mxu0 0.0
    %291 = vmatpush1.msra.mxu0 0.0
    %292 = vmatprep.subr.mxu0 0.0
    %293 = vmatpush1.msra.mxu0 0.0
    %294 = vmatprep.subr.mxu0 0.0
    %295 = vmatpush1.msra.mxu0 0.0
    %296 = vmatprep.subr.mxu0 0.0
    %297 = vmatpush1.msra.mxu0 0.0
    %298 = vmatprep.subr.mxu0 0.0
    %299 = vmatpush1.msra.mxu0 0.0
    %300 = vmatprep.mubr.f32.mxu0 0.0
    %301 = vmatmul.mubr.f32.gmra.mrb[0].mxu0 %v234
    %v302 = vpop.f32.mrb[0].mxu0
    %v303 = vadd.f32 %v230, %v302
    %v304 = vpop.f32.mrb[0].mxu0
    %305 = vdwg.mxu0
    %v307 = vcombine.high %v303, %v303
    %v309 = vunpack.c.l.s4 1966171168
    %v310 = vunpack.c.0.s8 %v309
    %v311 = vlaneseq
    %v312 = vshrl.u32 %v311, 7
    %v313 = vsub.s32 %v310, %v312
    %v314 = vrot.slane %v303, %v313
    %v316 = vunpack.c.l.s4 1966171168
    %v317 = vunpack.c.0.s8 %v316
    %v318 = vlaneseq
    %v319 = vshrl.u32 %v318, 7
    %v320 = vsub.s32 %v317, %v319
    %v321 = vrot.slane %v307, %v320
    %v322 = vcombine.high %v314, %v314
    %v323 = vcombine.high %v321, %v321
    %v325 = vunpack.c.l.s4 1966171168
    %v326 = vunpack.c.0.s8 %v325
    %v327 = vlaneseq
    %v328 = vshrl.u32 %v327, 7
    %v329 = vsub.s32 %v326, %v328
    %v330 = vrot.slane %v314, %v329
    %v332 = vunpack.c.l.s4 1966171168
    %v333 = vunpack.c.0.s8 %v332
    %v334 = vlaneseq
    %v335 = vshrl.u32 %v334, 7
    %v336 = vsub.s32 %v333, %v335
    %v337 = vrot.slane %v321, %v336
    %v339 = vunpack.c.l.s4 1966171168
    %v340 = vunpack.c.0.s8 %v339
    %v341 = vlaneseq
    %v342 = vshrl.u32 %v341, 7
    %v343 = vsub.s32 %v340, %v342
    %v344 = vrot.slane %v322, %v343
    %v346 = vunpack.c.l.s4 1966171168
    %v347 = vunpack.c.0.s8 %v346
    %v348 = vlaneseq
    %v349 = vshrl.u32 %v348, 7
    %v350 = vsub.s32 %v347, %v349
    %v351 = vrot.slane %v323, %v350
    %v352 = vcombine.high %v330, %v330
    %v353 = vcombine.high %v337, %v337
    %v354 = vcombine.high %v344, %v344
    %v355 = vcombine.high %v351, %v351
    %v356 = vlaneseq
    %v357 = vshrl.u32 %v356, 7
    %v358 = vsub.s32 0, %v357
    %v359 = vrot.slane %v330, %v358
    %v360 = vlaneseq
    %v361 = vshrl.u32 %v360, 7
    %v362 = vsub.s32 0, %v361
    %v363 = vrot.slane %v344, %v362
    %v364 = vlaneseq
    %v365 = vshrl.u32 %v364, 7
    %v366 = vsub.s32 0, %v365
    %v367 = vrot.slane %v352, %v366
    %v368 = vlaneseq
    %v369 = vshrl.u32 %v368, 7
    %v370 = vsub.s32 0, %v369
    %v371 = vrot.slane %v354, %v370
    %v372 = vlaneseq
    %v373 = vshrl.u32 %v372, 7
    %v374 = vsub.s32 0, %v373
    %v375 = vrot.slane %v337, %v374
    %v376 = vlaneseq
    %v377 = vshrl.u32 %v376, 7
    %v378 = vsub.s32 0, %v377
    %v379 = vrot.slane %v351, %v378
    %v380 = vlaneseq
    %v381 = vshrl.u32 %v380, 7
    %v382 = vsub.s32 0, %v381
    %v383 = vrot.slane %v353, %v382
    %v384 = vlaneseq
    %v385 = vshrl.u32 %v384, 7
    %v386 = vsub.s32 0, %v385
    %v387 = vrot.slane %v355, %v386
    %v396 = vadd.f32 %v184, %v359
    %v397 = vadd.f32 %v189, %v363
    %v398 = vadd.f32 %v194, %v367
    %v399 = vadd.f32 %v199, %v371
    %v400 = vadd.f32 %v204, %v375
    %v401 = vadd.f32 %v209, %v379
    %v402 = vadd.f32 %v214, %v383
    %v403 = vadd.f32 %v219, %v387
    %v404 = vtanh.pop %v396
    %v405 = vtanh.pop %v397
    %v406 = vtanh.pop %v398
    %v407 = vtanh.pop %v399
    %v408 = vtanh.pop %v400
    %v409 = vtanh.pop %v401
    %v410 = vtanh.pop %v402
    %v411 = vtanh.pop %v403
    %v412 = vld [vmem:[%s5] sm:$0x1]
    %v414 = vlaneseq
    %v415 = vshrl.u32 %v414, 7
    %v416 = vsub.s32 0, %v415
    %v417 = vrot.slane %v412, %v416
    %v419 = vmul.f32 %v404, %v417
    %v420 = vmul.f32 %v405, %v417
    %v421 = vmul.f32 %v406, %v417
    %v422 = vmul.f32 %v407, %v417
    %v423 = vmul.f32 %v408, %v417
    %v424 = vmul.f32 %v409, %v417
    %v425 = vmul.f32 %v410, %v417
    %v426 = vmul.f32 %v411, %v417
    %427 = vadd.xlane.f32.xlu0 %v419
    %v428 = vpop.xlane.xlu0 %427
    %429 = vadd.xlane.f32.xlu0 %v420
    %v430 = vpop.xlane.xlu0 %429
    %431 = vadd.xlane.f32.xlu0 %v421
    %v432 = vpop.xlane.xlu0 %431
    %433 = vadd.xlane.f32.xlu0 %v422
    %v434 = vpop.xlane.xlu0 %433
    %435 = vadd.xlane.f32.xlu0 %v423
    %v436 = vpop.xlane.xlu0 %435
    %437 = vadd.xlane.f32.xlu0 %v424
    %v438 = vpop.xlane.xlu0 %437
    %439 = vadd.xlane.f32.xlu0 %v425
    %v440 = vpop.xlane.xlu0 %439
    %441 = vadd.xlane.f32.xlu0 %v426
    %v442 = vpop.xlane.xlu0 %441
    %v451 = vlaneseq
    %v452 = vand.u32 %v451, 127
    %v453 = vlaneseq
    %v454 = vshrl.u32 %v453, 7
    %v455 = vsub.s32 %v452, %v454
    %v456 = vrot.slane %v428, %v455
    %v457 = vlaneseq
    %v458 = vshrl.u32 %v457, 7
    %v459 = vsub.s32 %v452, %v458
    %v460 = vrot.slane %v430, %v459
    %v461 = vlaneseq
    %v462 = vshrl.u32 %v461, 7
    %v463 = vsub.s32 %v452, %v462
    %v464 = vrot.slane %v432, %v463
    %v465 = vlaneseq
    %v466 = vshrl.u32 %v465, 7
    %v467 = vsub.s32 %v452, %v466
    %v468 = vrot.slane %v434, %v467
    %v469 = vlaneseq
    %v470 = vshrl.u32 %v469, 7
    %v471 = vsub.s32 %v452, %v470
    %v472 = vrot.slane %v436, %v471
    %v473 = vlaneseq
    %v474 = vshrl.u32 %v473, 7
    %v475 = vsub.s32 %v452, %v474
    %v476 = vrot.slane %v438, %v475
    %v477 = vlaneseq
    %v478 = vshrl.u32 %v477, 7
    %v479 = vsub.s32 %v452, %v478
    %v480 = vrot.slane %v440, %v479
    %v481 = vlaneseq
    %v482 = vshrl.u32 %v481, 7
    %v483 = vsub.s32 %v452, %v482
    %v484 = vrot.slane %v442, %v483
    %vm485 = vcmask 1041409
    %v486 = vsel %vm485, %v460, %v456
    %vm487 = vcmask 1042434
    %v488 = vsel %vm487, %v464, %v486
    %vm489 = vcmask 1043459
    %v490 = vsel %vm489, %v468, %v488
    %vm491 = vcmask 1044484
    %v492 = vsel %vm491, %v472, %v490
    %vm493 = vcmask 1045509
    %v494 = vsel %vm493, %v476, %v492
    %vm495 = vcmask 1046534
    %v496 = vsel %vm495, %v480, %v494
    %vm497 = vcmask 1047559
    %v498 = vsel %vm497, %v484, %v496
    %vm500 = vcmask 64512
    %v501 = vsel %vm500, %v498, -inf
    %502 = vmax.xlane.f32.xlu0 %v501
    %v503 = vpop.xlane.xlu0 %502
    %v505 = vlaneseq
    %v506 = vshrl.u32 %v505, 7
    %v507 = vsub.s32 0, %v506
    %v508 = vrot.slane %v503, %v507
    %v509 = vlaneseq
    %v510 = vshrl.u32 %v509, 7
    %v511 = vsub.s32 1, %v510
    %v512 = vrot.slane %v503, %v511
    %v513 = vlaneseq
    %v514 = vshrl.u32 %v513, 7
    %v515 = vsub.s32 2, %v514
    %v516 = vrot.slane %v503, %v515
    %v517 = vlaneseq
    %v518 = vshrl.u32 %v517, 7
    %v519 = vsub.s32 3, %v518
    %v520 = vrot.slane %v503, %v519
    %v521 = vlaneseq
    %v522 = vshrl.u32 %v521, 7
    %v523 = vsub.s32 4, %v522
    %v524 = vrot.slane %v503, %v523
    %v525 = vlaneseq
    %v526 = vshrl.u32 %v525, 7
    %v527 = vsub.s32 5, %v526
    %v528 = vrot.slane %v503, %v527
    %v529 = vlaneseq
    %v530 = vshrl.u32 %v529, 7
    %v531 = vsub.s32 6, %v530
    %v532 = vrot.slane %v503, %v531
    %v533 = vlaneseq
    %v534 = vshrl.u32 %v533, 7
    %v535 = vsub.s32 7, %v534
    %v536 = vrot.slane %v503, %v535
    %v545 = vsub.f32 %v428, %v508
    %v546 = vsub.f32 %v430, %v512
    %v547 = vsub.f32 %v432, %v516
    %v548 = vsub.f32 %v434, %v520
    %v549 = vsub.f32 %v436, %v524
    %v550 = vsub.f32 %v438, %v528
    %v551 = vsub.f32 %v440, %v532
    %v552 = vsub.f32 %v442, %v536
    %v553 = vmul.f32 %v545, 1.442695
    %v554 = vpow.pop %v553
    %v555 = vmul.f32 %v546, 1.442695
    %v556 = vpow.pop %v555
    %v557 = vmul.f32 %v547, 1.442695
    %v558 = vpow.pop %v557
    %v559 = vmul.f32 %v548, 1.442695
    %v560 = vpow.pop %v559
    %v561 = vmul.f32 %v549, 1.442695
    %v562 = vpow.pop %v561
    %v563 = vmul.f32 %v550, 1.442695
    %v564 = vpow.pop %v563
    %v565 = vmul.f32 %v551, 1.442695
    %v566 = vpow.pop %v565
    %v567 = vmul.f32 %v552, 1.442695
    %v568 = vpow.pop %v567
    %577 = vset.pattern.permute.xlu0 0
    %578 = vperm.xlu0 %577, %v554
    %v579 = vpop.permute.xlu0 %578
    %580 = vset.pattern.permute.xlu0 0
    %581 = vperm.xlu0 %580, %v556
    %v582 = vpop.permute.xlu0 %581
    %583 = vset.pattern.permute.xlu0 0
    %584 = vperm.xlu0 %583, %v558
    %v585 = vpop.permute.xlu0 %584
    %586 = vset.pattern.permute.xlu0 0
    %587 = vperm.xlu0 %586, %v560
    %v588 = vpop.permute.xlu0 %587
    %589 = vset.pattern.permute.xlu0 0
    %590 = vperm.xlu0 %589, %v562
    %v591 = vpop.permute.xlu0 %590
    %592 = vset.pattern.permute.xlu0 0
    %593 = vperm.xlu0 %592, %v564
    %v594 = vpop.permute.xlu0 %593
    %595 = vset.pattern.permute.xlu0 0
    %596 = vperm.xlu0 %595, %v566
    %v597 = vpop.permute.xlu0 %596
    %598 = vset.pattern.permute.xlu0 0
    %599 = vperm.xlu0 %598, %v568
    %v600 = vpop.permute.xlu0 %599
    %v601 = vlaneseq
    %v602 = vshrl.u32 %v601, 7
    %v603 = vsub.s32 %v452, %v602
    %v604 = vrot.slane %v579, %v603
    %v605 = vlaneseq
    %v606 = vshrl.u32 %v605, 7
    %v607 = vsub.s32 %v452, %v606
    %v608 = vrot.slane %v582, %v607
    %v609 = vlaneseq
    %v610 = vshrl.u32 %v609, 7
    %v611 = vsub.s32 %v452, %v610
    %v612 = vrot.slane %v585, %v611
    %v613 = vlaneseq
    %v614 = vshrl.u32 %v613, 7
    %v615 = vsub.s32 %v452, %v614
    %v616 = vrot.slane %v588, %v615
    %v617 = vlaneseq
    %v618 = vshrl.u32 %v617, 7
    %v619 = vsub.s32 %v452, %v618
    %v620 = vrot.slane %v591, %v619
    %v621 = vlaneseq
    %v622 = vshrl.u32 %v621, 7
    %v623 = vsub.s32 %v452, %v622
    %v624 = vrot.slane %v594, %v623
    %v625 = vlaneseq
    %v626 = vshrl.u32 %v625, 7
    %v627 = vsub.s32 %v452, %v626
    %v628 = vrot.slane %v597, %v627
    %v629 = vlaneseq
    %v630 = vshrl.u32 %v629, 7
    %v631 = vsub.s32 %v452, %v630
    %v632 = vrot.slane %v600, %v631
    %v633 = vsel %vm485, %v608, %v604
    %v634 = vsel %vm487, %v612, %v633
    %v635 = vsel %vm489, %v616, %v634
    %v636 = vsel %vm491, %v620, %v635
    %v637 = vsel %vm493, %v624, %v636
    %v638 = vsel %vm495, %v628, %v637
    %v639 = vsel %vm497, %v632, %v638
    %v641 = vsel %vm500, %v639, 0.0
    %642 = vadd.xlane.f32.xlu0 %v641
    %v643 = vpop.xlane.xlu0 %642
    %v644 = vrcp.pop %v643
    %v645 = vmul.f32 1.0, %v644
    %v647 = vlaneseq
    %v648 = vshrl.u32 %v647, 7
    %v649 = vsub.s32 0, %v648
    %v650 = vrot.slane %v645, %v649
    %v651 = vlaneseq
    %v652 = vshrl.u32 %v651, 7
    %v653 = vsub.s32 1, %v652
    %v654 = vrot.slane %v645, %v653
    %v655 = vlaneseq
    %v656 = vshrl.u32 %v655, 7
    %v657 = vsub.s32 2, %v656
    %v658 = vrot.slane %v645, %v657
    %v659 = vlaneseq
    %v660 = vshrl.u32 %v659, 7
    %v661 = vsub.s32 3, %v660
    %v662 = vrot.slane %v645, %v661
    %v663 = vlaneseq
    %v664 = vshrl.u32 %v663, 7
    %v665 = vsub.s32 4, %v664
    %v666 = vrot.slane %v645, %v665
    %v667 = vlaneseq
    %v668 = vshrl.u32 %v667, 7
    %v669 = vsub.s32 5, %v668
    %v670 = vrot.slane %v645, %v669
    %v671 = vlaneseq
    %v672 = vshrl.u32 %v671, 7
    %v673 = vsub.s32 6, %v672
    %v674 = vrot.slane %v645, %v673
    %v675 = vlaneseq
    %v676 = vshrl.u32 %v675, 7
    %v677 = vsub.s32 7, %v676
    %v678 = vrot.slane %v645, %v677
    %v687 = vmul.f32 %v554, %v650
    %v688 = vmul.f32 %v556, %v654
    %v689 = vmul.f32 %v558, %v658
    %v690 = vmul.f32 %v560, %v662
    %v691 = vmul.f32 %v562, %v666
    %v692 = vmul.f32 %v564, %v670
    %v693 = vmul.f32 %v566, %v674
    %v694 = vmul.f32 %v568, %v678
    %703 = vset.pattern.permute.xlu0 0
    %704 = vperm.xlu0 %703, %v687
    %v705 = vpop.permute.xlu0 %704
    %706 = vset.pattern.permute.xlu0 0
    %707 = vperm.xlu0 %706, %v688
    %v708 = vpop.permute.xlu0 %707
    %709 = vset.pattern.permute.xlu0 0
    %710 = vperm.xlu0 %709, %v689
    %v711 = vpop.permute.xlu0 %710
    %712 = vset.pattern.permute.xlu0 0
    %713 = vperm.xlu0 %712, %v690
    %v714 = vpop.permute.xlu0 %713
    %715 = vset.pattern.permute.xlu0 0
    %716 = vperm.xlu0 %715, %v691
    %v717 = vpop.permute.xlu0 %716
    %718 = vset.pattern.permute.xlu0 0
    %719 = vperm.xlu0 %718, %v692
    %v720 = vpop.permute.xlu0 %719
    %721 = vset.pattern.permute.xlu0 0
    %722 = vperm.xlu0 %721, %v693
    %v723 = vpop.permute.xlu0 %722
    %724 = vset.pattern.permute.xlu0 0
    %725 = vperm.xlu0 %724, %v694
    %v726 = vpop.permute.xlu0 %725
    %v727 = vlaneseq
    %v728 = vshrl.u32 %v727, 7
    %v729 = vsub.s32 %v452, %v728
    %v730 = vrot.slane %v705, %v729
    %v731 = vlaneseq
    %v732 = vshrl.u32 %v731, 7
    %v733 = vsub.s32 %v452, %v732
    %v734 = vrot.slane %v708, %v733
    %v735 = vlaneseq
    %v736 = vshrl.u32 %v735, 7
    %v737 = vsub.s32 %v452, %v736
    %v738 = vrot.slane %v711, %v737
    %v739 = vlaneseq
    %v740 = vshrl.u32 %v739, 7
    %v741 = vsub.s32 %v452, %v740
    %v742 = vrot.slane %v714, %v741
    %v743 = vlaneseq
    %v744 = vshrl.u32 %v743, 7
    %v745 = vsub.s32 %v452, %v744
    %v746 = vrot.slane %v717, %v745
    %v747 = vlaneseq
    %v748 = vshrl.u32 %v747, 7
    %v749 = vsub.s32 %v452, %v748
    %v750 = vrot.slane %v720, %v749
    %v751 = vlaneseq
    %v752 = vshrl.u32 %v751, 7
    %v753 = vsub.s32 %v452, %v752
    %v754 = vrot.slane %v723, %v753
    %v755 = vlaneseq
    %v756 = vshrl.u32 %v755, 7
    %v757 = vsub.s32 %v452, %v756
    %v758 = vrot.slane %v726, %v757
    %v759 = vsel %vm485, %v734, %v730
    %v760 = vsel %vm487, %v738, %v759
    %v761 = vsel %vm489, %v742, %v760
    %v762 = vsel %vm491, %v746, %v761
    %v763 = vsel %vm493, %v750, %v762
    %v764 = vsel %vm495, %v754, %v763
    %v765 = vsel %vm497, %v758, %v764
    %767 = vst.msk [vmem:[#allocation11] sm:$0xff] %vm500, %v765
    %v768 = vsel %vm500, %v730, 0
    %770 = vmatprep.subr.mxu0 0.0
    %771 = vmatpush1.msra.mxu0 %v80
    %772 = vmatprep.subr.mxu0 0.0
    %773 = vmatpush1.msra.mxu0 0.0
    %774 = vmatprep.subr.mxu0 0.0
    %775 = vmatpush1.msra.mxu0 0.0
    %776 = vmatprep.subr.mxu0 0.0
    %777 = vmatpush1.msra.mxu0 0.0
    %778 = vmatprep.subr.mxu0 0.0
    %779 = vmatpush1.msra.mxu0 0.0
    %780 = vmatprep.subr.mxu0 0.0
    %781 = vmatpush1.msra.mxu0 0.0
    %782 = vmatprep.subr.mxu0 0.0
    %783 = vmatpush1.msra.mxu0 0.0
    %784 = vmatprep.subr.mxu0 0.0
    %785 = vmatpush1.msra.mxu0 0.0
    %786 = vmatprep.subr.mxu0 0.0
    %787 = vmatpush1.msra.mxu0 0.0
    %788 = vmatprep.subr.mxu0 0.0
    %789 = vmatpush1.msra.mxu0 0.0
    %790 = vmatprep.subr.mxu0 0.0
    %791 = vmatpush1.msra.mxu0 0.0
    %792 = vmatprep.subr.mxu0 0.0
    %793 = vmatpush1.msra.mxu0 0.0
    %794 = vmatprep.subr.mxu0 0.0
    %795 = vmatpush1.msra.mxu0 0.0
    %796 = vmatprep.subr.mxu0 0.0
    %797 = vmatpush1.msra.mxu0 0.0
    %798 = vmatprep.subr.mxu0 0.0
    %799 = vmatpush1.msra.mxu0 0.0
    %800 = vmatprep.subr.mxu0 0.0
    %801 = vmatpush1.msra.mxu0 0.0
    %802 = vmatprep.subr.mxu0 0.0
    %803 = vmatpush1.msra.mxu0 0.0
    %804 = vmatprep.subr.mxu0 0.0
    %805 = vmatpush1.msra.mxu0 0.0
    %806 = vmatprep.subr.mxu0 0.0
    %807 = vmatpush1.msra.mxu0 0.0
    %808 = vmatprep.subr.mxu0 0.0
    %809 = vmatpush1.msra.mxu0 0.0
    %810 = vmatprep.subr.mxu0 0.0
    %811 = vmatpush1.msra.mxu0 0.0
    %812 = vmatprep.subr.mxu0 0.0
    %813 = vmatpush1.msra.mxu0 0.0
    %814 = vmatprep.subr.mxu0 0.0
    %815 = vmatpush1.msra.mxu0 0.0
    %816 = vmatprep.subr.mxu0 0.0
    %817 = vmatpush1.msra.mxu0 0.0
    %818 = vmatprep.subr.mxu0 0.0
    %819 = vmatpush1.msra.mxu0 0.0
    %820 = vmatprep.subr.mxu0 0.0
    %821 = vmatpush1.msra.mxu0 0.0
    %822 = vmatprep.subr.mxu0 0.0
    %823 = vmatpush1.msra.mxu0 0.0
    %824 = vmatprep.subr.mxu0 0.0
    %825 = vmatpush1.msra.mxu0 0.0
    %826 = vmatprep.subr.mxu0 0.0
    %827 = vmatpush1.msra.mxu0 0.0
    %828 = vmatprep.subr.mxu0 0.0
    %829 = vmatpush1.msra.mxu0 0.0
    %830 = vmatprep.subr.mxu0 0.0
    %831 = vmatpush1.msra.mxu0 0.0
    %832 = vmatprep.subr.mxu0 0.0
    %833 = vmatpush1.msra.mxu0 0.0
    %834 = vmatprep.mubr.f32.mxu0 0.0
    %835 = vmatmul.mubr.f32.gmra.mrb[0].mxu0 %v768
    %v836 = vpop.f32.mrb[0].mxu0
    %v837 = vadd.f32 0.0, %v836
    %v838 = vpop.f32.mrb[0].mxu0
    %839 = vdwg.mxu0
    %v840 = vsel %vm500, %v734, 0
    %842 = vmatprep.subr.mxu0 0.0
    %843 = vmatpush1.msra.mxu0 %v81
    %844 = vmatprep.subr.mxu0 0.0
    %845 = vmatpush1.msra.mxu0 0.0
    %846 = vmatprep.subr.mxu0 0.0
    %847 = vmatpush1.msra.mxu0 0.0
    %848 = vmatprep.subr.mxu0 0.0
    %849 = vmatpush1.msra.mxu0 0.0
    %850 = vmatprep.subr.mxu0 0.0
    %851 = vmatpush1.msra.mxu0 0.0
    %852 = vmatprep.subr.mxu0 0.0
    %853 = vmatpush1.msra.mxu0 0.0
    %854 = vmatprep.subr.mxu0 0.0
    %855 = vmatpush1.msra.mxu0 0.0
    %856 = vmatprep.subr.mxu0 0.0
    %857 = vmatpush1.msra.mxu0 0.0
    %858 = vmatprep.subr.mxu0 0.0
    %859 = vmatpush1.msra.mxu0 0.0
    %860 = vmatprep.subr.mxu0 0.0
    %861 = vmatpush1.msra.mxu0 0.0
    %862 = vmatprep.subr.mxu0 0.0
    %863 = vmatpush1.msra.mxu0 0.0
    %864 = vmatprep.subr.mxu0 0.0
    %865 = vmatpush1.msra.mxu0 0.0
    %866 = vmatprep.subr.mxu0 0.0
    %867 = vmatpush1.msra.mxu0 0.0
    %868 = vmatprep.subr.mxu0 0.0
    %869 = vmatpush1.msra.mxu0 0.0
    %870 = vmatprep.subr.mxu0 0.0
    %871 = vmatpush1.msra.mxu0 0.0
    %872 = vmatprep.subr.mxu0 0.0
    %873 = vmatpush1.msra.mxu0 0.0
    %874 = vmatprep.subr.mxu0 0.0
    %875 = vmatpush1.msra.mxu0 0.0
    %876 = vmatprep.subr.mxu0 0.0
    %877 = vmatpush1.msra.mxu0 0.0
    %878 = vmatprep.subr.mxu0 0.0
    %879 = vmatpush1.msra.mxu0 0.0
    %880 = vmatprep.subr.mxu0 0.0
    %881 = vmatpush1.msra.mxu0 0.0
    %882 = vmatprep.subr.mxu0 0.0
    %883 = vmatpush1.msra.mxu0 0.0
    %884 = vmatprep.subr.mxu0 0.0
    %885 = vmatpush1.msra.mxu0 0.0
    %886 = vmatprep.subr.mxu0 0.0
    %887 = vmatpush1.msra.mxu0 0.0
    %888 = vmatprep.subr.mxu0 0.0
    %889 = vmatpush1.msra.mxu0 0.0
    %890 = vmatprep.subr.mxu0 0.0
    %891 = vmatpush1.msra.mxu0 0.0
    %892 = vmatprep.subr.mxu0 0.0
    %893 = vmatpush1.msra.mxu0 0.0
    %894 = vmatprep.subr.mxu0 0.0
    %895 = vmatpush1.msra.mxu0 0.0
    %896 = vmatprep.subr.mxu0 0.0
    %897 = vmatpush1.msra.mxu0 0.0
    %898 = vmatprep.subr.mxu0 0.0
    %899 = vmatpush1.msra.mxu0 0.0
    %900 = vmatprep.subr.mxu0 0.0
    %901 = vmatpush1.msra.mxu0 0.0
    %902 = vmatprep.subr.mxu0 0.0
    %903 = vmatpush1.msra.mxu0 0.0
    %904 = vmatprep.subr.mxu0 0.0
    %905 = vmatpush1.msra.mxu0 0.0
    %906 = vmatprep.mubr.f32.mxu0 0.0
    %907 = vmatmul.mubr.f32.gmra.mrb[0].mxu0 %v840
    %v908 = vpop.f32.mrb[0].mxu0
    %v909 = vadd.f32 0.0, %v908
    %v910 = vpop.f32.mrb[0].mxu0
    %911 = vdwg.mxu0
    %v912 = vsel %vm500, %v738, 0
    %914 = vmatprep.subr.mxu0 0.0
    %915 = vmatpush1.msra.mxu0 %v82
    %916 = vmatprep.subr.mxu0 0.0
    %917 = vmatpush1.msra.mxu0 0.0
    %918 = vmatprep.subr.mxu0 0.0
    %919 = vmatpush1.msra.mxu0 0.0
    %920 = vmatprep.subr.mxu0 0.0
    %921 = vmatpush1.msra.mxu0 0.0
    %922 = vmatprep.subr.mxu0 0.0
    %923 = vmatpush1.msra.mxu0 0.0
    %924 = vmatprep.subr.mxu0 0.0
    %925 = vmatpush1.msra.mxu0 0.0
    %926 = vmatprep.subr.mxu0 0.0
    %927 = vmatpush1.msra.mxu0 0.0
    %928 = vmatprep.subr.mxu0 0.0
    %929 = vmatpush1.msra.mxu0 0.0
    %930 = vmatprep.subr.mxu0 0.0
    %931 = vmatpush1.msra.mxu0 0.0
    %932 = vmatprep.subr.mxu0 0.0
    %933 = vmatpush1.msra.mxu0 0.0
    %934 = vmatprep.subr.mxu0 0.0
    %935 = vmatpush1.msra.mxu0 0.0
    %936 = vmatprep.subr.mxu0 0.0
    %937 = vmatpush1.msra.mxu0 0.0
    %938 = vmatprep.subr.mxu0 0.0
    %939 = vmatpush1.msra.mxu0 0.0
    %940 = vmatprep.subr.mxu0 0.0
    %941 = vmatpush1.msra.mxu0 0.0
    %942 = vmatprep.subr.mxu0 0.0
    %943 = vmatpush1.msra.mxu0 0.0
    %944 = vmatprep.subr.mxu0 0.0
    %945 = vmatpush1.msra.mxu0 0.0
    %946 = vmatprep.subr.mxu0 0.0
    %947 = vmatpush1.msra.mxu0 0.0
    %948 = vmatprep.subr.mxu0 0.0
    %949 = vmatpush1.msra.mxu0 0.0
    %950 = vmatprep.subr.mxu0 0.0
    %951 = vmatpush1.msra.mxu0 0.0
    %952 = vmatprep.subr.mxu0 0.0
    %953 = vmatpush1.msra.mxu0 0.0
    %954 = vmatprep.subr.mxu0 0.0
    %955 = vmatpush1.msra.mxu0 0.0
    %956 = vmatprep.subr.mxu0 0.0
    %957 = vmatpush1.msra.mxu0 0.0
    %958 = vmatprep.subr.mxu0 0.0
    %959 = vmatpush1.msra.mxu0 0.0
    %960 = vmatprep.subr.mxu0 0.0
    %961 = vmatpush1.msra.mxu0 0.0
    %962 = vmatprep.subr.mxu0 0.0
    %963 = vmatpush1.msra.mxu0 0.0
    %964 = vmatprep.subr.mxu0 0.0
    %965 = vmatpush1.msra.mxu0 0.0
    %966 = vmatprep.subr.mxu0 0.0
    %967 = vmatpush1.msra.mxu0 0.0
    %968 = vmatprep.subr.mxu0 0.0
    %969 = vmatpush1.msra.mxu0 0.0
    %970 = vmatprep.subr.mxu0 0.0
    %971 = vmatpush1.msra.mxu0 0.0
    %972 = vmatprep.subr.mxu0 0.0
    %973 = vmatpush1.msra.mxu0 0.0
    %974 = vmatprep.subr.mxu0 0.0
    %975 = vmatpush1.msra.mxu0 0.0
    %976 = vmatprep.subr.mxu0 0.0
    %977 = vmatpush1.msra.mxu0 0.0
    %978 = vmatprep.mubr.f32.mxu0 0.0
    %979 = vmatmul.mubr.f32.gmra.mrb[0].mxu0 %v912
    %v980 = vpop.f32.mrb[0].mxu0
    %v981 = vadd.f32 0.0, %v980
    %v982 = vpop.f32.mrb[0].mxu0
    %983 = vdwg.mxu0
    %v984 = vsel %vm500, %v742, 0
    %986 = vmatprep.subr.mxu0 0.0
    %987 = vmatpush1.msra.mxu0 %v83
    %988 = vmatprep.subr.mxu0 0.0
    %989 = vmatpush1.msra.mxu0 0.0
    %990 = vmatprep.subr.mxu0 0.0
    %991 = vmatpush1.msra.mxu0 0.0
    %992 = vmatprep.subr.mxu0 0.0
    %993 = vmatpush1.msra.mxu0 0.0
    %994 = vmatprep.subr.mxu0 0.0
    %995 = vmatpush1.msra.mxu0 0.0
    %996 = vmatprep.subr.mxu0 0.0
    %997 = vmatpush1.msra.mxu0 0.0
    %998 = vmatprep.subr.mxu0 0.0
    %999 = vmatpush1.msra.mxu0 0.0
    %1000 = vmatprep.subr.mxu0 0.0
    %1001 = vmatpush1.msra.mxu0 0.0
    %1002 = vmatprep.subr.mxu0 0.0
    %1003 = vmatpush1.msra.mxu0 0.0
    %1004 = vmatprep.subr.mxu0 0.0
    %1005 = vmatpush1.msra.mxu0 0.0
    %1006 = vmatprep.subr.mxu0 0.0
    %1007 = vmatpush1.msra.mxu0 0.0
    %1008 = vmatprep.subr.mxu0 0.0
    %1009 = vmatpush1.msra.mxu0 0.0
    %1010 = vmatprep.subr.mxu0 0.0
    %1011 = vmatpush1.msra.mxu0 0.0
    %1012 = vmatprep.subr.mxu0 0.0
    %1013 = vmatpush1.msra.mxu0 0.0
    %1014 = vmatprep.subr.mxu0 0.0
    %1015 = vmatpush1.msra.mxu0 0.0
    %1016 = vmatprep.subr.mxu0 0.0
    %1017 = vmatpush1.msra.mxu0 0.0
    %1018 = vmatprep.subr.mxu0 0.0
    %1019 = vmatpush1.msra.mxu0 0.0
    %1020 = vmatprep.subr.mxu0 0.0
    %1021 = vmatpush1.msra.mxu0 0.0
    %1022 = vmatprep.subr.mxu0 0.0
    %1023 = vmatpush1.msra.mxu0 0.0
    %1024 = vmatprep.subr.mxu0 0.0
    %1025 = vmatpush1.msra.mxu0 0.0
    %1026 = vmatprep.subr.mxu0 0.0
    %1027 = vmatpush1.msra.mxu0 0.0
    %1028 = vmatprep.subr.mxu0 0.0
    %1029 = vmatpush1.msra.mxu0 0.0
    %1030 = vmatprep.subr.mxu0 0.0
    %1031 = vmatpush1.msra.mxu0 0.0
    %1032 = vmatprep.subr.mxu0 0.0
    %1033 = vmatpush1.msra.mxu0 0.0
    %1034 = vmatprep.subr.mxu0 0.0
    %1035 = vmatpush1.msra.mxu0 0.0
    %1036 = vmatprep.subr.mxu0 0.0
    %1037 = vmatpush1.msra.mxu0 0.0
    %1038 = vmatprep.subr.mxu0 0.0
    %1039 = vmatpush1.msra.mxu0 0.0
    %1040 = vmatprep.subr.mxu0 0.0
    %1041 = vmatpush1.msra.mxu0 0.0
    %1042 = vmatprep.subr.mxu0 0.0
    %1043 = vmatpush1.msra.mxu0 0.0
    %1044 = vmatprep.subr.mxu0 0.0
    %1045 = vmatpush1.msra.mxu0 0.0
    %1046 = vmatprep.subr.mxu0 0.0
    %1047 = vmatpush1.msra.mxu0 0.0
    %1048 = vmatprep.subr.mxu0 0.0
    %1049 = vmatpush1.msra.mxu0 0.0
    %1050 = vmatprep.mubr.f32.mxu0 0.0
    %1051 = vmatmul.mubr.f32.gmra.mrb[0].mxu0 %v984
    %v1052 = vpop.f32.mrb[0].mxu0
    %v1053 = vadd.f32 0.0, %v1052
    %v1054 = vpop.f32.mrb[0].mxu0
    %1055 = vdwg.mxu0
    %v1056 = vsel %vm500, %v746, 0
    %1058 = vmatprep.subr.mxu0 0.0
    %1059 = vmatpush1.msra.mxu0 %v84
    %1060 = vmatprep.subr.mxu0 0.0
    %1061 = vmatpush1.msra.mxu0 0.0
    %1062 = vmatprep.subr.mxu0 0.0
    %1063 = vmatpush1.msra.mxu0 0.0
    %1064 = vmatprep.subr.mxu0 0.0
    %1065 = vmatpush1.msra.mxu0 0.0
    %1066 = vmatprep.subr.mxu0 0.0
    %1067 = vmatpush1.msra.mxu0 0.0
    %1068 = vmatprep.subr.mxu0 0.0
    %1069 = vmatpush1.msra.mxu0 0.0
    %1070 = vmatprep.subr.mxu0 0.0
    %1071 = vmatpush1.msra.mxu0 0.0
    %1072 = vmatprep.subr.mxu0 0.0
    %1073 = vmatpush1.msra.mxu0 0.0
    %1074 = vmatprep.subr.mxu0 0.0
    %1075 = vmatpush1.msra.mxu0 0.0
    %1076 = vmatprep.subr.mxu0 0.0
    %1077 = vmatpush1.msra.mxu0 0.0
    %1078 = vmatprep.subr.mxu0 0.0
    %1079 = vmatpush1.msra.mxu0 0.0
    %1080 = vmatprep.subr.mxu0 0.0
    %1081 = vmatpush1.msra.mxu0 0.0
    %1082 = vmatprep.subr.mxu0 0.0
    %1083 = vmatpush1.msra.mxu0 0.0
    %1084 = vmatprep.subr.mxu0 0.0
    %1085 = vmatpush1.msra.mxu0 0.0
    %1086 = vmatprep.subr.mxu0 0.0
    %1087 = vmatpush1.msra.mxu0 0.0
    %1088 = vmatprep.subr.mxu0 0.0
    %1089 = vmatpush1.msra.mxu0 0.0
    %1090 = vmatprep.subr.mxu0 0.0
    %1091 = vmatpush1.msra.mxu0 0.0
    %1092 = vmatprep.subr.mxu0 0.0
    %1093 = vmatpush1.msra.mxu0 0.0
    %1094 = vmatprep.subr.mxu0 0.0
    %1095 = vmatpush1.msra.mxu0 0.0
    %1096 = vmatprep.subr.mxu0 0.0
    %1097 = vmatpush1.msra.mxu0 0.0
    %1098 = vmatprep.subr.mxu0 0.0
    %1099 = vmatpush1.msra.mxu0 0.0
    %1100 = vmatprep.subr.mxu0 0.0
    %1101 = vmatpush1.msra.mxu0 0.0
    %1102 = vmatprep.subr.mxu0 0.0
    %1103 = vmatpush1.msra.mxu0 0.0
    %1104 = vmatprep.subr.mxu0 0.0
    %1105 = vmatpush1.msra.mxu0 0.0
    %1106 = vmatprep.subr.mxu0 0.0
    %1107 = vmatpush1.msra.mxu0 0.0
    %1108 = vmatprep.subr.mxu0 0.0
    %1109 = vmatpush1.msra.mxu0 0.0
    %1110 = vmatprep.subr.mxu0 0.0
    %1111 = vmatpush1.msra.mxu0 0.0
    %1112 = vmatprep.subr.mxu0 0.0
    %1113 = vmatpush1.msra.mxu0 0.0
    %1114 = vmatprep.subr.mxu0 0.0
    %1115 = vmatpush1.msra.mxu0 0.0
    %1116 = vmatprep.subr.mxu0 0.0
    %1117 = vmatpush1.msra.mxu0 0.0
    %1118 = vmatprep.subr.mxu0 0.0
    %1119 = vmatpush1.msra.mxu0 0.0
    %1120 = vmatprep.subr.mxu0 0.0
    %1121 = vmatpush1.msra.mxu0 0.0
    %1122 = vmatprep.mubr.f32.mxu0 0.0
    %1123 = vmatmul.mubr.f32.gmra.mrb[0].mxu0 %v1056
    %v1124 = vpop.f32.mrb[0].mxu0
    %v1125 = vadd.f32 0.0, %v1124
    %v1126 = vpop.f32.mrb[0].mxu0
    %1127 = vdwg.mxu0
    %v1128 = vsel %vm500, %v750, 0
    %1130 = vmatprep.subr.mxu0 0.0
    %1131 = vmatpush1.msra.mxu0 %v85
    %1132 = vmatprep.subr.mxu0 0.0
    %1133 = vmatpush1.msra.mxu0 0.0
    %1134 = vmatprep.subr.mxu0 0.0
    %1135 = vmatpush1.msra.mxu0 0.0
    %1136 = vmatprep.subr.mxu0 0.0
    %1137 = vmatpush1.msra.mxu0 0.0
    %1138 = vmatprep.subr.mxu0 0.0
    %1139 = vmatpush1.msra.mxu0 0.0
    %1140 = vmatprep.subr.mxu0 0.0
    %1141 = vmatpush1.msra.mxu0 0.0
    %1142 = vmatprep.subr.mxu0 0.0
    %1143 = vmatpush1.msra.mxu0 0.0
    %1144 = vmatprep.subr.mxu0 0.0
    %1145 = vmatpush1.msra.mxu0 0.0
    %1146 = vmatprep.subr.mxu0 0.0
    %1147 = vmatpush1.msra.mxu0 0.0
    %1148 = vmatprep.subr.mxu0 0.0
    %1149 = vmatpush1.msra.mxu0 0.0
    %1150 = vmatprep.subr.mxu0 0.0
    %1151 = vmatpush1.msra.mxu0 0.0
    %1152 = vmatprep.subr.mxu0 0.0
    %1153 = vmatpush1.msra.mxu0 0.0
    %1154 = vmatprep.subr.mxu0 0.0
    %1155 = vmatpush1.msra.mxu0 0.0
    %1156 = vmatprep.subr.mxu0 0.0
    %1157 = vmatpush1.msra.mxu0 0.0
    %1158 = vmatprep.subr.mxu0 0.0
    %1159 = vmatpush1.msra.mxu0 0.0
    %1160 = vmatprep.subr.mxu0 0.0
    %1161 = vmatpush1.msra.mxu0 0.0
    %1162 = vmatprep.subr.mxu0 0.0
    %1163 = vmatpush1.msra.mxu0 0.0
    %1164 = vmatprep.subr.mxu0 0.0
    %1165 = vmatpush1.msra.mxu0 0.0
    %1166 = vmatprep.subr.mxu0 0.0
    %1167 = vmatpush1.msra.mxu0 0.0
    %1168 = vmatprep.subr.mxu0 0.0
    %1169 = vmatpush1.msra.mxu0 0.0
    %1170 = vmatprep.subr.mxu0 0.0
    %1171 = vmatpush1.msra.mxu0 0.0
    %1172 = vmatprep.subr.mxu0 0.0
    %1173 = vmatpush1.msra.mxu0 0.0
    %1174 = vmatprep.subr.mxu0 0.0
    %1175 = vmatpush1.msra.mxu0 0.0
    %1176 = vmatprep.subr.mxu0 0.0
    %1177 = vmatpush1.msra.mxu0 0.0
    %1178 = vmatprep.subr.mxu0 0.0
    %1179 = vmatpush1.msra.mxu0 0.0
    %1180 = vmatprep.subr.mxu0 0.0
    %1181 = vmatpush1.msra.mxu0 0.0
    %1182 = vmatprep.subr.mxu0 0.0
    %1183 = vmatpush1.msra.mxu0 0.0
    %1184 = vmatprep.subr.mxu0 0.0
    %1185 = vmatpush1.msra.mxu0 0.0
    %1186 = vmatprep.subr.mxu0 0.0
    %1187 = vmatpush1.msra.mxu0 0.0
    %1188 = vmatprep.subr.mxu0 0.0
    %1189 = vmatpush1.msra.mxu0 0.0
    %1190 = vmatprep.subr.mxu0 0.0
    %1191 = vmatpush1.msra.mxu0 0.0
    %1192 = vmatprep.subr.mxu0 0.0
    %1193 = vmatpush1.msra.mxu0 0.0
    %1194 = vmatprep.mubr.f32.mxu0 0.0
    %1195 = vmatmul.mubr.f32.gmra.mrb[0].mxu0 %v1128
    %v1196 = vpop.f32.mrb[0].mxu0
    %v1197 = vadd.f32 0.0, %v1196
    %v1198 = vpop.f32.mrb[0].mxu0
    %1199 = vdwg.mxu0
    %v1200 = vsel %vm500, %v754, 0
    %1202 = vmatprep.subr.mxu0 0.0
    %1203 = vmatpush1.msra.mxu0 %v86
    %1204 = vmatprep.subr.mxu0 0.0
    %1205 = vmatpush1.msra.mxu0 0.0
    %1206 = vmatprep.subr.mxu0 0.0
    %1207 = vmatpush1.msra.mxu0 0.0
    %1208 = vmatprep.subr.mxu0 0.0
    %1209 = vmatpush1.msra.mxu0 0.0
    %1210 = vmatprep.subr.mxu0 0.0
    %1211 = vmatpush1.msra.mxu0 0.0
    %1212 = vmatprep.subr.mxu0 0.0
    %1213 = vmatpush1.msra.mxu0 0.0
    %1214 = vmatprep.subr.mxu0 0.0
    %1215 = vmatpush1.msra.mxu0 0.0
    %1216 = vmatprep.subr.mxu0 0.0
    %1217 = vmatpush1.msra.mxu0 0.0
    %1218 = vmatprep.subr.mxu0 0.0
    %1219 = vmatpush1.msra.mxu0 0.0
    %1220 = vmatprep.subr.mxu0 0.0
    %1221 = vmatpush1.msra.mxu0 0.0
    %1222 = vmatprep.subr.mxu0 0.0
    %1223 = vmatpush1.msra.mxu0 0.0
    %1224 = vmatprep.subr.mxu0 0.0
    %1225 = vmatpush1.msra.mxu0 0.0
    %1226 = vmatprep.subr.mxu0 0.0
    %1227 = vmatpush1.msra.mxu0 0.0
    %1228 = vmatprep.subr.mxu0 0.0
    %1229 = vmatpush1.msra.mxu0 0.0
    %1230 = vmatprep.subr.mxu0 0.0
    %1231 = vmatpush1.msra.mxu0 0.0
    %1232 = vmatprep.subr.mxu0 0.0
    %1233 = vmatpush1.msra.mxu0 0.0
    %1234 = vmatprep.subr.mxu0 0.0
    %1235 = vmatpush1.msra.mxu0 0.0
    %1236 = vmatprep.subr.mxu0 0.0
    %1237 = vmatpush1.msra.mxu0 0.0
    %1238 = vmatprep.subr.mxu0 0.0
    %1239 = vmatpush1.msra.mxu0 0.0
    %1240 = vmatprep.subr.mxu0 0.0
    %1241 = vmatpush1.msra.mxu0 0.0
    %1242 = vmatprep.subr.mxu0 0.0
    %1243 = vmatpush1.msra.mxu0 0.0
    %1244 = vmatprep.subr.mxu0 0.0
    %1245 = vmatpush1.msra.mxu0 0.0
    %1246 = vmatprep.subr.mxu0 0.0
    %1247 = vmatpush1.msra.mxu0 0.0
    %1248 = vmatprep.subr.mxu0 0.0
    %1249 = vmatpush1.msra.mxu0 0.0
    %1250 = vmatprep.subr.mxu0 0.0
    %1251 = vmatpush1.msra.mxu0 0.0
    %1252 = vmatprep.subr.mxu0 0.0
    %1253 = vmatpush1.msra.mxu0 0.0
    %1254 = vmatprep.subr.mxu0 0.0
    %1255 = vmatpush1.msra.mxu0 0.0
    %1256 = vmatprep.subr.mxu0 0.0
    %1257 = vmatpush1.msra.mxu0 0.0
    %1258 = vmatprep.subr.mxu0 0.0
    %1259 = vmatpush1.msra.mxu0 0.0
    %1260 = vmatprep.subr.mxu0 0.0
    %1261 = vmatpush1.msra.mxu0 0.0
    %1262 = vmatprep.subr.mxu0 0.0
    %1263 = vmatpush1.msra.mxu0 0.0
    %1264 = vmatprep.subr.mxu0 0.0
    %1265 = vmatpush1.msra.mxu0 0.0
    %1266 = vmatprep.mubr.f32.mxu0 0.0
    %1267 = vmatmul.mubr.f32.gmra.mrb[0].mxu0 %v1200
    %v1268 = vpop.f32.mrb[0].mxu0
    %v1269 = vadd.f32 0.0, %v1268
    %v1270 = vpop.f32.mrb[0].mxu0
    %1271 = vdwg.mxu0
    %v1272 = vsel %vm500, %v758, 0
    %1274 = vmatprep.subr.mxu0 0.0
    %1275 = vmatpush1.msra.mxu0 %v87
    %1276 = vmatprep.subr.mxu0 0.0
    %1277 = vmatpush1.msra.mxu0 0.0
    %1278 = vmatprep.subr.mxu0 0.0
    %1279 = vmatpush1.msra.mxu0 0.0
    %1280 = vmatprep.subr.mxu0 0.0
    %1281 = vmatpush1.msra.mxu0 0.0
    %1282 = vmatprep.subr.mxu0 0.0
    %1283 = vmatpush1.msra.mxu0 0.0
    %1284 = vmatprep.subr.mxu0 0.0
    %1285 = vmatpush1.msra.mxu0 0.0
    %1286 = vmatprep.subr.mxu0 0.0
    %1287 = vmatpush1.msra.mxu0 0.0
    %1288 = vmatprep.subr.mxu0 0.0
    %1289 = vmatpush1.msra.mxu0 0.0
    %1290 = vmatprep.subr.mxu0 0.0
    %1291 = vmatpush1.msra.mxu0 0.0
    %1292 = vmatprep.subr.mxu0 0.0
    %1293 = vmatpush1.msra.mxu0 0.0
    %1294 = vmatprep.subr.mxu0 0.0
    %1295 = vmatpush1.msra.mxu0 0.0
    %1296 = vmatprep.subr.mxu0 0.0
    %1297 = vmatpush1.msra.mxu0 0.0
    %1298 = vmatprep.subr.mxu0 0.0
    %1299 = vmatpush1.msra.mxu0 0.0
    %1300 = vmatprep.subr.mxu0 0.0
    %1301 = vmatpush1.msra.mxu0 0.0
    %1302 = vmatprep.subr.mxu0 0.0
    %1303 = vmatpush1.msra.mxu0 0.0
    %1304 = vmatprep.subr.mxu0 0.0
    %1305 = vmatpush1.msra.mxu0 0.0
    %1306 = vmatprep.subr.mxu0 0.0
    %1307 = vmatpush1.msra.mxu0 0.0
    %1308 = vmatprep.subr.mxu0 0.0
    %1309 = vmatpush1.msra.mxu0 0.0
    %1310 = vmatprep.subr.mxu0 0.0
    %1311 = vmatpush1.msra.mxu0 0.0
    %1312 = vmatprep.subr.mxu0 0.0
    %1313 = vmatpush1.msra.mxu0 0.0
    %1314 = vmatprep.subr.mxu0 0.0
    %1315 = vmatpush1.msra.mxu0 0.0
    %1316 = vmatprep.subr.mxu0 0.0
    %1317 = vmatpush1.msra.mxu0 0.0
    %1318 = vmatprep.subr.mxu0 0.0
    %1319 = vmatpush1.msra.mxu0 0.0
    %1320 = vmatprep.subr.mxu0 0.0
    %1321 = vmatpush1.msra.mxu0 0.0
    %1322 = vmatprep.subr.mxu0 0.0
    %1323 = vmatpush1.msra.mxu0 0.0
    %1324 = vmatprep.subr.mxu0 0.0
    %1325 = vmatpush1.msra.mxu0 0.0
    %1326 = vmatprep.subr.mxu0 0.0
    %1327 = vmatpush1.msra.mxu0 0.0
    %1328 = vmatprep.subr.mxu0 0.0
    %1329 = vmatpush1.msra.mxu0 0.0
    %1330 = vmatprep.subr.mxu0 0.0
    %1331 = vmatpush1.msra.mxu0 0.0
    %1332 = vmatprep.subr.mxu0 0.0
    %1333 = vmatpush1.msra.mxu0 0.0
    %1334 = vmatprep.subr.mxu0 0.0
    %1335 = vmatpush1.msra.mxu0 0.0
    %1336 = vmatprep.subr.mxu0 0.0
    %1337 = vmatpush1.msra.mxu0 0.0
    %1338 = vmatprep.mubr.f32.mxu0 0.0
    %1339 = vmatmul.mubr.f32.gmra.mrb[0].mxu0 %v1272
    %v1340 = vpop.f32.mrb[0].mxu0
    %v1341 = vadd.f32 0.0, %v1340
    %v1342 = vpop.f32.mrb[0].mxu0
    %1343 = vdwg.mxu0
    %v1352 = vrot.slane %v909, 7
    %v1353 = vsel %vm485, %v1352, %v837
    %v1354 = vrot.slane %v981, 6
    %v1355 = vsel %vm487, %v1354, %v1353
    %v1356 = vrot.slane %v1053, 5
    %v1357 = vsel %vm489, %v1356, %v1355
    %v1358 = vrot.slane %v1125, 4
    %v1359 = vsel %vm491, %v1358, %v1357
    %v1360 = vrot.slane %v1197, 3
    %v1361 = vsel %vm493, %v1360, %v1359
    %v1362 = vrot.slane %v1269, 2
    %v1363 = vsel %vm495, %v1362, %v1361
    %v1364 = vrot.slane %v1341, 1
    %v1365 = vsel %vm497, %v1364, %v1363
    %1367 = vst.msk [vmem:[#allocation10] sm:$0xff] %vm92, %v1365
    // Predicated region
    $region42: #{tpu_custom_call.1} parent=1 // pred_check
      _
    $region43: #{tpu_custom_call.1} parent=1 // pred_check_branch
      %1369 = sbr.rel (0) target = $region45
    $region44: #{tpu_custom_call.1} parent=1 // pred_region
      %s1371 = ssub.s32 128, 128
      %1372 = vsyncadd [#allocation4], %s1371
      %s1374 = sshll.u32 [#allocation10], 4
      %s1375 = int_to_ptr.vmem [resolvable:$true] %s1374
      %1377 = dma.vmem_to_hbm [thread:$0]  %s1375, 128, %s6, [#allocation4]
    $region45: #{tpu_custom_call.1} parent=1 // pred_fallthru
      _
    // Predicated region
    $region46: #{tpu_custom_call.1} parent=1 // pred_check
      _
    $region47: #{tpu_custom_call.1} parent=1 // pred_check_branch
      %1379 = sbr.rel (0) target = $region49
    $region48: #{tpu_custom_call.1} parent=1 // pred_region
      %s1381 = ssub.s32 128, 128
      %1382 = vsyncadd [#allocation12], %s1381
      %s1384 = sshll.u32 [#allocation11], 4
      %s1385 = int_to_ptr.vmem [resolvable:$true] %s1384
      %1387 = dma.vmem_to_hbm [thread:$0]  %s1385, 128, %s7, [#allocation12]
    $region49: #{tpu_custom_call.1} parent=1 // pred_fallthru
      _
    // Predicated region
    $region50: #{tpu_custom_call.1} parent=1 // pred_check
      _
    $region51: #{tpu_custom_call.1} parent=1 // pred_check_branch
      %1389 = sbr.rel (0) target = $region53
    $region52: #{tpu_custom_call.1} parent=1 // pred_region
      %1390 = dma.done [#allocation4], 128
    $region53: #{tpu_custom_call.1} parent=1 // pred_fallthru
      _
    // Predicated region
    $region54: #{tpu_custom_call.1} parent=1 // pred_check
      _
    $region55: #{tpu_custom_call.1} parent=1 // pred_check_branch
      %1392 = sbr.rel (0) target = $region57
    $region56: #{tpu_custom_call.1} parent=1 // pred_region
      %1393 = dma.done [#allocation12], 128
    $region57: #{tpu_custom_call.1} parent=1 // pred_fallthru
      _
    %1394 = vsyncpa [#allocation3], 1
    %1395 = vsyncpa [#allocation6], 1
    %1396 = vsyncpa [#allocation9], 1
    %1397 = vsyncpa [#allocation4], 1
    %1398 = vsyncpa [#allocation12], 1

</llo_original>
